<compile_context>
chip_gen: v7x
topology: tpu7x:2x2x1
jax: 0.10.0
libtpu: 0.0.40
codegen_flags: <defaults>
</compile_context>

<pallas_src>
import functools

import jax
import jax.numpy as jnp
from jax.experimental import pallas as pl
from jax.experimental.pallas import tpu as pltpu


# ----------------------------- kernels --------------------------------------

def _max_dim1_kernel(x_ref, o_ref):
    # x_ref: (TB, D, TM) in VMEM; o_ref: (TB, TM). Whole D in one block.
    o_ref[...] = jnp.max(x_ref[...], axis=1)


def _make_acc_kernel(d_total, td, need_mask):
    """Running-max accumulator over a tiled D axis (grid axis 2, 'arbitrary')."""

    def kernel(x_ref, o_ref):
        k = pl.program_id(2)
        x = x_ref[...]
        if need_mask:
            # Last D block is partial (cdiv grid): mask OOB rows so garbage
            # padding cannot corrupt the max.
            if jnp.issubdtype(x.dtype, jnp.floating):
                neg = jnp.array(-jnp.inf, x.dtype)
            else:
                neg = jnp.array(jnp.iinfo(x.dtype).min, x.dtype)
            iota = jax.lax.broadcasted_iota(jnp.int32, x.shape, 1)
            valid = (k * td + iota) < d_total
            x = jnp.where(valid, x, neg)
        part = jnp.max(x, axis=1)  # (TB, TM)

        @pl.when(k == 0)
        def _():
            o_ref[...] = part

        @pl.when(k > 0)
        def _():
            o_ref[...] = jnp.maximum(o_ref[...], part)

    return kernel


# ------------------------- tiling heuristics ---------------------------------

# Below this total size the Pallas launch / per-step overhead dominates.
_MIN_PALLAS_BYTES = 1 * 1024 * 1024

_SUBLANE_PACK = {4: 8, 2: 16, 1: 32}


@functools.lru_cache(maxsize=1)
def _vmem_budgets():
    """(block_budget_bytes, vmem_limit_bytes), generation-aware."""
    cap = None
    try:
        cap = getattr(pltpu.get_tpu_info(), "vmem_capacity_bytes", None)
    except Exception:
        cap = None
    if not cap or cap <= 0:
        cap = 128 * 1024 * 1024
    if cap <= 64 * 1024 * 1024:
        # v7x-class: 64 MiB VMEM per TensorCore.
        return 40 * 1024 * 1024, 48 * 1024 * 1024
    # v5e / v6e class: 128 MiB VMEM.
    return 64 * 1024 * 1024, 96 * 1024 * 1024


def _tb_candidates(B, sub):
    """Divisors of B that are sublane-pack (or 8) multiples, plus B; desc."""
    cands = set()
    for step in (sub, 8):
        for tb in range(step, B + 1, step):
            if B % tb == 0:
                cands.add(tb)
    cands.add(B)
    return sorted(cands, reverse=True)


def _tm_candidates(M):
    """Full M first (contiguous DMA), then 128-multiple divisors, desc."""
    cands = [M]
    if M % 128 == 0:
        cands += sorted(
            (tm for tm in range(128, M, 128) if M % tm == 0), reverse=True
        )
    return cands


def _choose_tiling(B, D, M, itemsize, budget):
    """Return (TB, TD, TM, need_mask) or None if nothing legal fits."""
    sub = _SUBLANE_PACK.get(itemsize, 8)

    def blk_bytes(tb, td, tm):
        # double-buffered input block + double-buffered output block
        return 2 * tb * td * tm * itemsize + 2 * tb * tm * itemsize

    tb_cands = _tb_candidates(B, sub)
    tm_cands = _tm_candidates(M)

    for tm in tm_cands:
        # Fast path: whole D resident in the block (no accumulator loop).
        # Prefer the largest TB that fits (fewer grid steps, bigger DMAs).
        for tb in tb_cands:
            if blk_bytes(tb, D, tm) <= budget:
                return tb, D, tm, False

        # D-tiled path: keep output sublane-dense with the smallest TB and
        # maximize TD (the contiguous chunk per batch row when tm == M).
        tb = tb_cands[-1]
        per_row = 2 * tb * tm * itemsize          # bytes per D-row (dbl-buffered)
        out_bytes = 2 * tb * tm * itemsize        # output block (dbl-buffered)
        avail = budget - out_bytes
        if avail <= 0:
            continue
        td_max = min(avail // per_row, D)
        if td_max < sub:
            continue
        # Prefer an exact divisor of D (no masked tail) if it is reasonably
        # close to the budget-maximal TD.
        td_div = 0
        for td in range(sub, td_max + 1, sub):
            if D % td == 0:
                td_div = td
        td_free = (td_max // sub) * sub
        if td_div >= max(sub, td_free // 2):
            return tb, td_div, tm, False
        return tb, td_free, tm, (D % td_free != 0)

    return None


def _ensure_two_parallel_steps(B, M, tb, tm, tb_cands, tm_cands):
    """Never collapse the 'parallel' grid to a single step (feeds 2 TCs)."""
    if (B // tb) * (M // tm) >= 2:
        return tb, tm
    smaller_tb = [c for c in tb_cands if c < tb]
    if smaller_tb:
        return smaller_tb[0], tm            # largest proper candidate -> bt >= 2
    smaller_tm = [c for c in tm_cands if c < tm and M % c == 0]
    if smaller_tm:
        return tb, smaller_tm[0]
    return tb, tm


# ------------------------------ wrapper --------------------------------------

def max_dim1_pallas(x: jax.Array, *, block_budget: int | None = None) -> jax.Array:
    """Max over axis=1 of a (B, D, M) array using a Pallas TPU kernel."""
    B, D, M = x.shape
    itemsize = jnp.dtype(x.dtype).itemsize
    default_budget, vmem_limit = _vmem_budgets()
    budget = default_budget if block_budget is None else block_budget

    choice = _choose_tiling(B, D, M, itemsize, budget)
    if choice is None:
        # No legal block fits the VMEM budget -> let XLA handle it.
        return jnp.max(x, axis=1)
    TB, TD, TM, need_mask = choice

    sub = _SUBLANE_PACK.get(itemsize, 8)
    TB, TM = _ensure_two_parallel_steps(
        B, M, TB, TM, _tb_candidates(B, sub), _tm_candidates(M)
    )

    bt, mt = B // TB, M // TM
    dt = pl.cdiv(D, TD)

    cost = pl.CostEstimate(
        flops=B * D * M,
        transcendentals=0,
        bytes_accessed=B * D * M * itemsize + B * M * itemsize,
    )

    if TD == D:
        grid_spec = pltpu.PrefetchScalarGridSpec(
            num_scalar_prefetch=0,
            grid=(bt, mt),
            in_specs=[pl.BlockSpec((TB, D, TM), lambda i, j: (i, 0, j))],
            out_specs=pl.BlockSpec((TB, TM), lambda i, j: (i, j)),
        )
        kernel = _max_dim1_kernel
        semantics = ("parallel", "parallel")
    else:
        grid_spec = pltpu.PrefetchScalarGridSpec(
            num_scalar_prefetch=0,
            grid=(bt, mt, dt),
            in_specs=[pl.BlockSpec((TB, TD, TM), lambda i, j, k: (i, k, j))],
            out_specs=pl.BlockSpec((TB, TM), lambda i, j, k: (i, j)),
        )
        kernel = _make_acc_kernel(D, TD, need_mask)
        semantics = ("parallel", "parallel", "arbitrary")

    return pl.pallas_call(
        kernel,
        out_shape=jax.ShapeDtypeStruct((B, M), x.dtype),
        grid_spec=grid_spec,
        compiler_params=pltpu.CompilerParams(
            dimension_semantics=semantics,
            vmem_limit_bytes=vmem_limit,
        ),
        cost_estimate=cost,
    )(x)


class Model:
    """JAX/Pallas port of the PyTorch Model (max reduction along `dim`)."""

    def __init__(self, dim: int):
        self.dim = dim

    def __call__(self, x: jax.Array) -> jax.Array:
        if (
            self.dim == 1
            and x.ndim == 3
            and x.size * jnp.dtype(x.dtype).itemsize >= _MIN_PALLAS_BYTES
        ):
            return max_dim1_pallas(x)
        # Fallback mirrors torch.max(x, dim)[0] values for other shapes/dims.
        return jnp.max(x, axis=self.dim)


if __name__ == "__main__":
    key = jax.random.PRNGKey(0)
    model = Model(dim=1)

    # 1) The shape the original module's Triton fast path targets:
    #    (16, 256, 256) f32 -> whole-D block, TM = M, grid (2, 1) so both
    #    TensorCores get one block each on dual-TC chips.
    B, D, M = 16, 256, 256
    x = jax.random.normal(key, (B, D, M), dtype=jnp.float32)
    out = jax.block_until_ready(model(x))
    ref = jnp.max(x, axis=1)
    assert out.shape == (B, M), out.shape
    assert jnp.allclose(out, ref), "Pallas max-reduction mismatch (whole-D path)"

    # 2) Exercise the D-tiled running-max accumulator path (clean TD divisor)
    #    by forcing a small block budget.
    k2, k3 = jax.random.split(jax.random.PRNGKey(1))
    x2 = jax.random.normal(k2, (8, 1024, 256), dtype=jnp.float32)
    out2 = jax.block_until_ready(
        max_dim1_pallas(x2, block_budget=2 * 1024 * 1024)
    )
    assert out2.shape == (8, 256), out2.shape
    assert jnp.allclose(out2, jnp.max(x2, axis=1)), "D-tiled path mismatch"

    # 3) Exercise the masked-tail accumulator path (D not a multiple of TD).
    x3 = jax.random.normal(k3, (8, 204, 256), dtype=jnp.float32)
    out3 = jax.block_until_ready(
        max_dim1_pallas(x3, block_budget=256 * 1024)
    )
    assert out3.shape == (8, 256), out3.shape
    assert jnp.allclose(out3, jnp.max(x3, axis=1)), "masked D-tail path mismatch"

    print("KERNEL_OK")
</pallas_src>

<mosaic_0001>
module attributes {stable_mosaic.version = 11 : i64} {
  func.func @_max_dim1_kernel(%arg0: i32, %arg1: i32, %arg2: memref<8x256x256xf32, #tpu.memory_space<vmem>>, %arg3: memref<8x256xf32, #tpu.memory_space<vmem>>) attributes {dimension_semantics = [#tpu.dimension_semantics<parallel>, #tpu.dimension_semantics<parallel>], iteration_bounds = array<i64: 2, 1>, scalar_prefetch = 0 : i64, scratch_operands = 0 : i64, tpu.core_type = #tpu.core_type<tc>, window_params = [{transform_indices = @transform_0, window_bounds = array<i64: 8, 256, 256>}, {transform_indices = @transform_1, window_bounds = array<i64: 8, 256>}]} {
    %c0 = arith.constant 0 : index
    %c0_0 = arith.constant 0 : index
    %c0_1 = arith.constant 0 : index
    %0 = vector.load %arg2[%c0, %c0_0, %c0_1] : memref<8x256x256xf32, #tpu.memory_space<vmem>>, vector<8x256x256xf32>
    %cst = arith.constant dense<0xFF800000> : vector<8x256xf32>
    %1 = vector.multi_reduction <maximumf>, %0, %cst [1] : vector<8x256x256xf32> to vector<8x256xf32>
    %c0_2 = arith.constant 0 : index
    %c0_3 = arith.constant 0 : index
    %2 = vector.load %arg3[%c0_2, %c0_3] : memref<8x256xf32, #tpu.memory_space<vmem>>, vector<8x256xf32>
    tpu.vector_store %arg3[%c0_2, %c0_3], %1 {strides = array<i32>} : memref<8x256xf32, #tpu.memory_space<vmem>>, vector<8x256xf32>,
    return
  }
  func.func @transform_0(%arg0: i32, %arg1: i32) -> (i32, i32, i32) {
    %c0_i32 = arith.constant 0 : i32
    %c0_i32_0 = arith.constant 0 : i32
    return %arg0, %c0_i32, %arg1 : i32, i32, i32
  }
  func.func @transform_1(%arg0: i32, %arg1: i32) -> (i32, i32) {
    %c0_i32 = arith.constant 0 : i32
    return %arg0, %arg1 : i32, i32
  }
}

</mosaic_0001>

<llo_original>
// kernel: tpu_custom_call.1
$region0: #{tpu_custom_call.1}
  #allocation0 [shape = 'u32[]', space=smem, size = 0x4, offset = 0x4, fixed_abs, tag = 'smem constant byte address 0x4 - core index']
  #allocation1 [shape = 'u32[144,128]{1,0:T(1,128)}', space=vmem, size = 0x12000, scoped, tag = 'internal scratch']
  %s0 = inlined_call_operand.hbm [shape: f32[16,256,256], index: 0, kind: input, shape index: {}]
  %s1 = inlined_call_operand.hbm [shape: f32[16,256], index: 1, kind: output, shape index: {}]
  %s2 = sld [smem:[#allocation0]]
  $region41: #{tpu_custom_call.1} parent=0
    _
  %s4 = ssub.s32 1, %s2
  %s5 = scalar_select 0, %s4, %s2
  $region1: #{tpu_custom_call.1} parent=0
    #allocation2 [shape = 'u8[4194304]{0}', space=vmem, size = 0x400000, scoped, tag = 'input window, operand 0']
    #allocation3 [shape = 's32[2]{0}', space=sflag, size = 0x8, scoped, tag = 'scoped memory for tpu_custom_call.1']
    #allocation4 [shape = 's32[2]{0}', space=sflag, size = 0x8, scoped, tag = 'scoped memory for tpu_custom_call.1']
    #allocation5 [shape = 'u8[16384]{0}', space=vmem, size = 0x4000, scoped, tag = 'output window, operand 0']
    %6 = vsyncpa [#allocation3], 0
    %s7 = scalar_lea.sflag [#allocation3], 1
    %8 = vsyncpa %s7, 0
    %9 = vsyncpa [#allocation4], 0
    %s10 = scalar_lea.sflag [#allocation4], 1
    %11 = vsyncpa %s10, 0
    loop: start=0, step=1, limit=4
    $region2: #{tpu_custom_call.1} parent=1 // loop_pre_header
      _
    $region3: #{tpu_custom_call.1} parent=1 // loop_header
      %s13 = sphi 0, %s17
      %p14 = scmp.ge.s32.totalorder %s13, 4
      %s20 = sphi 0, %s32
      %s21 = sphi 0, %s28
      %s22 = sphi 0, %s20
      %s23 = sphi 0, %s21
      %s24 = sphi 0, %s22
      %s25 = sphi 0, %s23
      %s37 = sphi 0, %s39
      %s40 = sphi 0, %s37
      %s41 = sphi 0, %s40
      %s57 = sphi 0, %s41
      %s65 = sphi 0, %s67
      %s68 = sphi 0, %s65
      %s69 = sphi 0, %s68
      %s85 = sphi 0, %s69
    $region4: #{tpu_custom_call.1} parent=1 // loop_header_branch
      %16 = sbr.rel (%p14) target = $region8
    $region5: #{tpu_custom_call.1} parent=1 // loop_body
      %s18 = ssub.s32 %s13, 1
      %s19 = ssub.s32 %s13, 2
      %s26 = sadd.s32 1, %s21
      %p27 = scmp.ge.s32.totalorder %s26, 1
      %s28 = scalar_select %p27, 0, %s26
      %s29 = sadd.s32 1, %s20
      %s30 = scalar_select %p27, %s29, %s20
      %p31 = scmp.ge.s32.totalorder %s30, 2
      %s32 = scalar_select %p31, 0, %s30
      %s33 = ssub.s32 %s20, %s32
      %s34 = ssub.s32 %s21, %s28
      %s35 = sor.u32 %s33, %s34
      %p36 = scmp.eq.s32.totalorder %s35, 0
      %s38 = sadd.s32 %s37, 1
      %s39 = scalar_select %p36, %s37, %s38
      %p42 = pneg %p36
      %p43 = scmp.eq.s32.totalorder %s13, 1
      %p44 = por %p42, %p43
      %p45 = scmp.ne.s32.totalorder %s37, %s40
      %p46 = scmp.eq.s32.totalorder %s13, 0
      %p47 = por %p45, %p46
      %p48 = scmp.ne.s32.totalorder %s37, %s40
      %p49 = scmp.eq.s32.totalorder %s18, 1
      %p50 = por %p48, %p49
      %p51 = scmp.ne.s32.totalorder %s40, %s41
      %p52 = scmp.eq.s32.totalorder %s18, 0
      %p53 = por %p51, %p52
      %p54 = scmp.ne.s32.totalorder %s40, %s41
      %p55 = scmp.eq.s32.totalorder %s19, 1
      %p56 = por %p54, %p55
      %p58 = scmp.ne.s32.totalorder %s41, %s57
      %p59 = scmp.eq.s32.totalorder %s19, 0
      %p60 = por %p58, %p59
      %s61 = ssub.s32 %s20, %s32
      %s62 = ssub.s32 %s21, %s28
      %s63 = sor.u32 %s61, %s62
      %p64 = scmp.eq.s32.totalorder %s63, 0
      %s66 = sadd.s32 %s65, 1
      %s67 = scalar_select %p64, %s65, %s66
      %p70 = pneg %p64
      %p71 = scmp.eq.s32.totalorder %s13, 1
      %p72 = por %p70, %p71
      %p73 = scmp.ne.s32.totalorder %s65, %s68
      %p74 = scmp.eq.s32.totalorder %s13, 0
      %p75 = por %p73, %p74
      %p76 = scmp.ne.s32.totalorder %s65, %s68
      %p77 = scmp.eq.s32.totalorder %s18, 1
      %p78 = por %p76, %p77
      %p79 = scmp.ne.s32.totalorder %s68, %s69
      %p80 = scmp.eq.s32.totalorder %s18, 0
      %p81 = por %p79, %p80
      %p82 = scmp.ne.s32.totalorder %s68, %s69
      %p83 = scmp.eq.s32.totalorder %s19, 1
      %p84 = por %p82, %p83
      %p86 = scmp.ne.s32.totalorder %s69, %s85
      %p87 = scmp.eq.s32.totalorder %s19, 0
      %p88 = por %p86, %p87
      %p89 = scmp.le.s32.totalorder 1, %s13
      %p90 = scmp.lt.s32.totalorder %s13, 3
      %p91 = pnand %p89, %p90
      %p92 = pneg %p91
      // Predicated region
      $region9: #{tpu_custom_call.1} parent=5 // pred_check
        _
      $region10: #{tpu_custom_call.1} parent=5 // pred_check_branch
        %94 = sbr.rel (%p91) target = $region12
      $region11: #{tpu_custom_call.1} parent=5 // pred_region
        %s95 = ssub.s32 %s13, 1
      $region12: #{tpu_custom_call.1} parent=5 // pred_fallthru
        _
      %p96 = scmp.lt.s32.totalorder %s13, 2
      // Predicated region
      $region13: #{tpu_custom_call.1} parent=5 // pred_check
        %p97 = pneg %p96
      $region14: #{tpu_custom_call.1} parent=5 // pred_check_branch
        %99 = sbr.rel (%p97) target = $region16
      $region15: #{tpu_custom_call.1} parent=5 // pred_region
        // Predicated region
        $region17: #{tpu_custom_call.1} parent=15 // pred_check
          %p100 = pneg %p47
        $region18: #{tpu_custom_call.1} parent=15 // pred_check_branch
          %102 = sbr.rel (%p100) target = $region20
        $region19: #{tpu_custom_call.1} parent=15 // pred_region
          %s103 = sand.u32 %s37, 1
          %s104 = scalar_lea.sflag [#allocation3], %s103
          %s105 = sand.u32 %s37, 1
          %s106 = smul.addr %s105, 4096
          %s107 = scalar_lea.vmem [#allocation2], %s106
          %s108 = smul.u32 8, %s20
          %s109 = smul.u32 2, %s21
          %s111 = ssub.s32 65536, 65536
          %112 = vsyncadd %s104, %s111
          %s113 = smul.addr %s108, 64
          %s114 = sadd.s32 %s109, %s113
          %s115 = smul.addr %s114, 128
          %s116 = scalar_lea.hbm %s0, %s115
          %s117 = sshll.u32 %s107, 4
          %s118 = int_to_ptr.vmem [resolvable:$true] %s117
          %123 = dma.hbm_to_vmem [thread:$0]  %s116, 65536, %s118, %s104, 256, 256, 16
        $region20: #{tpu_custom_call.1} parent=15 // pred_fallthru
          _
      $region16: #{tpu_custom_call.1} parent=5 // pred_fallthru
        _
      %p124 = scmp.le.s32.totalorder 1, %s13
      %p125 = scmp.lt.s32.totalorder %s13, 3
      %p126 = pnand %p124, %p125
      %p127 = pneg %p126
      // Predicated region
      $region21: #{tpu_custom_call.1} parent=5 // pred_check
        _
      $region22: #{tpu_custom_call.1} parent=5 // pred_check_branch
        %129 = sbr.rel (%p126) target = $region24
      $region23: #{tpu_custom_call.1} parent=5 // pred_region
        %s130 = ssub.s32 %s13, 1
        %s131 = sand.u32 %s40, 1
        %s132 = scalar_lea.sflag [#allocation3], %s131
        %s133 = sand.u32 %s40, 1
        %s134 = smul.addr %s133, 4096
        %s135 = scalar_lea.vmem [#allocation2], %s134
        // Predicated region
        $region25: #{tpu_custom_call.1} parent=23 // pred_check
          %p136 = pneg %p53
        $region26: #{tpu_custom_call.1} parent=23 // pred_check_branch
          %138 = sbr.rel (%p136) target = $region28
        $region27: #{tpu_custom_call.1} parent=23 // pred_region
          %139 = dma.done %s132, 65536
        $region28: #{tpu_custom_call.1} parent=23 // pred_fallthru
          _
        %s140 = sand.u32 %s40, 1
        %s141 = scalar_lea.sflag [#allocation3], %s140
        %s142 = sand.u32 %s40, 1
        %s143 = smul.addr %s142, 4096
        %s144 = scalar_lea.vmem [#allocation2], %s143
        %p145 = pneg %p53
        %p146 = pneg %p50
        %p147 = pneg %p81
        %p148 = pneg %p78
        %s149 = sand.u32 %s68, 1
        %s150 = scalar_lea.sflag [#allocation4], %s149
        %s151 = sand.u32 %s68, 1
        %s152 = smul.addr %s151, 16
        %s153 = scalar_lea.vmem [#allocation5], %s152
        %s154 = smul.u32 8, %s22
        %s155 = smul.u32 2, %s23
        %s156 = smul.u32 2, %s23
        %v157 = vld [vmem:[%s135] sm:$0xff]
        %v158 = vld [vmem:[%s135 + $0x8] sm:$0xff]
        %v159 = vld [vmem:[%s135 + $0x10] sm:$0xff]
        %v160 = vld [vmem:[%s135 + $0x18] sm:$0xff]
        %v161 = vld [vmem:[%s135 + $0x20] sm:$0xff]
        %v162 = vld [vmem:[%s135 + $0x28] sm:$0xff]
        %v163 = vld [vmem:[%s135 + $0x30] sm:$0xff]
        %v164 = vld [vmem:[%s135 + $0x38] sm:$0xff]
        %v165 = vld [vmem:[%s135 + $0x40] sm:$0xff]
        %v166 = vld [vmem:[%s135 + $0x48] sm:$0xff]
        %v167 = vld [vmem:[%s135 + $0x50] sm:$0xff]
        %v168 = vld [vmem:[%s135 + $0x58] sm:$0xff]
        %v169 = vld [vmem:[%s135 + $0x60] sm:$0xff]
        %v170 = vld [vmem:[%s135 + $0x68] sm:$0xff]
        %v171 = vld [vmem:[%s135 + $0x70] sm:$0xff]
        %v172 = vld [vmem:[%s135 + $0x78] sm:$0xff]
        %v173 = vld [vmem:[%s135 + $0x80] sm:$0xff]
        %v174 = vld [vmem:[%s135 + $0x88] sm:$0xff]
        %v175 = vld [vmem:[%s135 + $0x90] sm:$0xff]
        %v176 = vld [vmem:[%s135 + $0x98] sm:$0xff]
        %v177 = vld [vmem:[%s135 + $0xa0] sm:$0xff]
        %v178 = vld [vmem:[%s135 + $0xa8] sm:$0xff]
        %v179 = vld [vmem:[%s135 + $0xb0] sm:$0xff]
        %v180 = vld [vmem:[%s135 + $0xb8] sm:$0xff]
        %v181 = vld [vmem:[%s135 + $0xc0] sm:$0xff]
        %v182 = vld [vmem:[%s135 + $0xc8] sm:$0xff]
        %v183 = vld [vmem:[%s135 + $0xd0] sm:$0xff]
        %v184 = vld [vmem:[%s135 + $0xd8] sm:$0xff]
        %v185 = vld [vmem:[%s135 + $0xe0] sm:$0xff]
        %v186 = vld [vmem:[%s135 + $0xe8] sm:$0xff]
        %v187 = vld [vmem:[%s135 + $0xf0] sm:$0xff]
        %v188 = vld [vmem:[%s135 + $0xf8] sm:$0xff]
        %v189 = vld [vmem:[%s135 + $0x100] sm:$0xff]
        %v190 = vld [vmem:[%s135 + $0x108] sm:$0xff]
        %v191 = vld [vmem:[%s135 + $0x110] sm:$0xff]
        %v192 = vld [vmem:[%s135 + $0x118] sm:$0xff]
        %v193 = vld [vmem:[%s135 + $0x120] sm:$0xff]
        %v194 = vld [vmem:[%s135 + $0x128] sm:$0xff]
        %v195 = vld [vmem:[%s135 + $0x130] sm:$0xff]
        %v196 = vld [vmem:[%s135 + $0x138] sm:$0xff]
        %v197 = vld [vmem:[%s135 + $0x140] sm:$0xff]
        %v198 = vld [vmem:[%s135 + $0x148] sm:$0xff]
        %v199 = vld [vmem:[%s135 + $0x150] sm:$0xff]
        %v200 = vld [vmem:[%s135 + $0x158] sm:$0xff]
        %v201 = vld [vmem:[%s135 + $0x160] sm:$0xff]
        %v202 = vld [vmem:[%s135 + $0x168] sm:$0xff]
        %v203 = vld [vmem:[%s135 + $0x170] sm:$0xff]
        %v204 = vld [vmem:[%s135 + $0x178] sm:$0xff]
        %v205 = vld [vmem:[%s135 + $0x180] sm:$0xff]
        %v206 = vld [vmem:[%s135 + $0x188] sm:$0xff]
        %v207 = vld [vmem:[%s135 + $0x190] sm:$0xff]
        %v208 = vld [vmem:[%s135 + $0x198] sm:$0xff]
        %v209 = vld [vmem:[%s135 + $0x1a0] sm:$0xff]
        %v210 = vld [vmem:[%s135 + $0x1a8] sm:$0xff]
        %v211 = vld [vmem:[%s135 + $0x1b0] sm:$0xff]
        %v212 = vld [vmem:[%s135 + $0x1b8] sm:$0xff]
        %v213 = vld [vmem:[%s135 + $0x1c0] sm:$0xff]
        %v214 = vld [vmem:[%s135 + $0x1c8] sm:$0xff]
        %v215 = vld [vmem:[%s135 + $0x1d0] sm:$0xff]
        %v216 = vld [vmem:[%s135 + $0x1d8] sm:$0xff]
        %v217 = vld [vmem:[%s135 + $0x1e0] sm:$0xff]
        %v218 = vld [vmem:[%s135 + $0x1e8] sm:$0xff]
        %v219 = vld [vmem:[%s135 + $0x1f0] sm:$0xff]
        %v220 = vld [vmem:[%s135 + $0x1f8] sm:$0xff]
        %v221 = vld [vmem:[%s135 + $0x200] sm:$0xff]
        %v222 = vld [vmem:[%s135 + $0x208] sm:$0xff]
        %v223 = vld [vmem:[%s135 + $0x210] sm:$0xff]
        %v224 = vld [vmem:[%s135 + $0x218] sm:$0xff]
        %v225 = vld [vmem:[%s135 + $0x220] sm:$0xff]
        %v226 = vld [vmem:[%s135 + $0x228] sm:$0xff]
        %v227 = vld [vmem:[%s135 + $0x230] sm:$0xff]
        %v228 = vld [vmem:[%s135 + $0x238] sm:$0xff]
        %v229 = vld [vmem:[%s135 + $0x240] sm:$0xff]
        %v230 = vld [vmem:[%s135 + $0x248] sm:$0xff]
        %v231 = vld [vmem:[%s135 + $0x250] sm:$0xff]
        %v232 = vld [vmem:[%s135 + $0x258] sm:$0xff]
        %v233 = vld [vmem:[%s135 + $0x260] sm:$0xff]
        %v234 = vld [vmem:[%s135 + $0x268] sm:$0xff]
        %v235 = vld [vmem:[%s135 + $0x270] sm:$0xff]
        %v236 = vld [vmem:[%s135 + $0x278] sm:$0xff]
        %v237 = vld [vmem:[%s135 + $0x280] sm:$0xff]
        %v238 = vld [vmem:[%s135 + $0x288] sm:$0xff]
        %v239 = vld [vmem:[%s135 + $0x290] sm:$0xff]
        %v240 = vld [vmem:[%s135 + $0x298] sm:$0xff]
        %v241 = vld [vmem:[%s135 + $0x2a0] sm:$0xff]
        %v242 = vld [vmem:[%s135 + $0x2a8] sm:$0xff]
        %v243 = vld [vmem:[%s135 + $0x2b0] sm:$0xff]
        %v244 = vld [vmem:[%s135 + $0x2b8] sm:$0xff]
        %v245 = vld [vmem:[%s135 + $0x2c0] sm:$0xff]
        %v246 = vld [vmem:[%s135 + $0x2c8] sm:$0xff]
        %v247 = vld [vmem:[%s135 + $0x2d0] sm:$0xff]
        %v248 = vld [vmem:[%s135 + $0x2d8] sm:$0xff]
        %v249 = vld [vmem:[%s135 + $0x2e0] sm:$0xff]
        %v250 = vld [vmem:[%s135 + $0x2e8] sm:$0xff]
        %v251 = vld [vmem:[%s135 + $0x2f0] sm:$0xff]
        %v252 = vld [vmem:[%s135 + $0x2f8] sm:$0xff]
        %v253 = vld [vmem:[%s135 + $0x300] sm:$0xff]
        %v254 = vld [vmem:[%s135 + $0x308] sm:$0xff]
        %v255 = vld [vmem:[%s135 + $0x310] sm:$0xff]
        %v256 = vld [vmem:[%s135 + $0x318] sm:$0xff]
        %v257 = vld [vmem:[%s135 + $0x320] sm:$0xff]
        %v258 = vld [vmem:[%s135 + $0x328] sm:$0xff]
        %v259 = vld [vmem:[%s135 + $0x330] sm:$0xff]
        %v260 = vld [vmem:[%s135 + $0x338] sm:$0xff]
        %v261 = vld [vmem:[%s135 + $0x340] sm:$0xff]
        %v262 = vld [vmem:[%s135 + $0x348] sm:$0xff]
        %v263 = vld [vmem:[%s135 + $0x350] sm:$0xff]
        %v264 = vld [vmem:[%s135 + $0x358] sm:$0xff]
        %v265 = vld [vmem:[%s135 + $0x360] sm:$0xff]
        %v266 = vld [vmem:[%s135 + $0x368] sm:$0xff]
        %v267 = vld [vmem:[%s135 + $0x370] sm:$0xff]
        %v268 = vld [vmem:[%s135 + $0x378] sm:$0xff]
        %v269 = vld [vmem:[%s135 + $0x380] sm:$0xff]
        %v270 = vld [vmem:[%s135 + $0x388] sm:$0xff]
        %v271 = vld [vmem:[%s135 + $0x390] sm:$0xff]
        %v272 = vld [vmem:[%s135 + $0x398] sm:$0xff]
        %v273 = vld [vmem:[%s135 + $0x3a0] sm:$0xff]
        %v274 = vld [vmem:[%s135 + $0x3a8] sm:$0xff]
        %v275 = vld [vmem:[%s135 + $0x3b0] sm:$0xff]
        %v276 = vld [vmem:[%s135 + $0x3b8] sm:$0xff]
        %v277 = vld [vmem:[%s135 + $0x3c0] sm:$0xff]
        %v278 = vld [vmem:[%s135 + $0x3c8] sm:$0xff]
        %v279 = vld [vmem:[%s135 + $0x3d0] sm:$0xff]
        %v280 = vld [vmem:[%s135 + $0x3d8] sm:$0xff]
        %v281 = vld [vmem:[%s135 + $0x3e0] sm:$0xff]
        %v282 = vld [vmem:[%s135 + $0x3e8] sm:$0xff]
        %v283 = vld [vmem:[%s135 + $0x3f0] sm:$0xff]
        %v284 = vld [vmem:[%s135 + $0x3f8] sm:$0xff]
        %v285 = vld [vmem:[%s135 + $0x400] sm:$0xff]
        %v286 = vld [vmem:[%s135 + $0x408] sm:$0xff]
        %v287 = vld [vmem:[%s135 + $0x410] sm:$0xff]
        %v288 = vld [vmem:[%s135 + $0x418] sm:$0xff]
        %v289 = vld [vmem:[%s135 + $0x420] sm:$0xff]
        %v290 = vld [vmem:[%s135 + $0x428] sm:$0xff]
        %v291 = vld [vmem:[%s135 + $0x430] sm:$0xff]
        %v292 = vld [vmem:[%s135 + $0x438] sm:$0xff]
        %v293 = vld [vmem:[%s135 + $0x440] sm:$0xff]
        %v294 = vld [vmem:[%s135 + $0x448] sm:$0xff]
        %v295 = vld [vmem:[%s135 + $0x450] sm:$0xff]
        %v296 = vld [vmem:[%s135 + $0x458] sm:$0xff]
        %v297 = vld [vmem:[%s135 + $0x460] sm:$0xff]
        %v298 = vld [vmem:[%s135 + $0x468] sm:$0xff]
        %v299 = vld [vmem:[%s135 + $0x470] sm:$0xff]
        %v300 = vld [vmem:[%s135 + $0x478] sm:$0xff]
        %v301 = vld [vmem:[%s135 + $0x480] sm:$0xff]
        %v302 = vld [vmem:[%s135 + $0x488] sm:$0xff]
        %v303 = vld [vmem:[%s135 + $0x490] sm:$0xff]
        %v304 = vld [vmem:[%s135 + $0x498] sm:$0xff]
        %v305 = vld [vmem:[%s135 + $0x4a0] sm:$0xff]
        %v306 = vld [vmem:[%s135 + $0x4a8] sm:$0xff]
        %v307 = vld [vmem:[%s135 + $0x4b0] sm:$0xff]
        %v308 = vld [vmem:[%s135 + $0x4b8] sm:$0xff]
        %v309 = vld [vmem:[%s135 + $0x4c0] sm:$0xff]
        %v310 = vld [vmem:[%s135 + $0x4c8] sm:$0xff]
        %v311 = vld [vmem:[%s135 + $0x4d0] sm:$0xff]
        %v312 = vld [vmem:[%s135 + $0x4d8] sm:$0xff]
        %v313 = vld [vmem:[%s135 + $0x4e0] sm:$0xff]
        %v314 = vld [vmem:[%s135 + $0x4e8] sm:$0xff]
        %v315 = vld [vmem:[%s135 + $0x4f0] sm:$0xff]
        %v316 = vld [vmem:[%s135 + $0x4f8] sm:$0xff]
        %v317 = vld [vmem:[%s135 + $0x500] sm:$0xff]
        %v318 = vld [vmem:[%s135 + $0x508] sm:$0xff]
        %v319 = vld [vmem:[%s135 + $0x510] sm:$0xff]
        %v320 = vld [vmem:[%s135 + $0x518] sm:$0xff]
        %v321 = vld [vmem:[%s135 + $0x520] sm:$0xff]
        %v322 = vld [vmem:[%s135 + $0x528] sm:$0xff]
        %v323 = vld [vmem:[%s135 + $0x530] sm:$0xff]
        %v324 = vld [vmem:[%s135 + $0x538] sm:$0xff]
        %v325 = vld [vmem:[%s135 + $0x540] sm:$0xff]
        %v326 = vld [vmem:[%s135 + $0x548] sm:$0xff]
        %v327 = vld [vmem:[%s135 + $0x550] sm:$0xff]
        %v328 = vld [vmem:[%s135 + $0x558] sm:$0xff]
        %v329 = vld [vmem:[%s135 + $0x560] sm:$0xff]
        %v330 = vld [vmem:[%s135 + $0x568] sm:$0xff]
        %v331 = vld [vmem:[%s135 + $0x570] sm:$0xff]
        %v332 = vld [vmem:[%s135 + $0x578] sm:$0xff]
        %v333 = vld [vmem:[%s135 + $0x580] sm:$0xff]
        %v334 = vld [vmem:[%s135 + $0x588] sm:$0xff]
        %v335 = vld [vmem:[%s135 + $0x590] sm:$0xff]
        %v336 = vld [vmem:[%s135 + $0x598] sm:$0xff]
        %v337 = vld [vmem:[%s135 + $0x5a0] sm:$0xff]
        %v338 = vld [vmem:[%s135 + $0x5a8] sm:$0xff]
        %v339 = vld [vmem:[%s135 + $0x5b0] sm:$0xff]
        %v340 = vld [vmem:[%s135 + $0x5b8] sm:$0xff]
        %v341 = vld [vmem:[%s135 + $0x5c0] sm:$0xff]
        %v342 = vld [vmem:[%s135 + $0x5c8] sm:$0xff]
        %v343 = vld [vmem:[%s135 + $0x5d0] sm:$0xff]
        %v344 = vld [vmem:[%s135 + $0x5d8] sm:$0xff]
        %v345 = vld [vmem:[%s135 + $0x5e0] sm:$0xff]
        %v346 = vld [vmem:[%s135 + $0x5e8] sm:$0xff]
        %v347 = vld [vmem:[%s135 + $0x5f0] sm:$0xff]
        %v348 = vld [vmem:[%s135 + $0x5f8] sm:$0xff]
        %v349 = vld [vmem:[%s135 + $0x600] sm:$0xff]
        %v350 = vld [vmem:[%s135 + $0x608] sm:$0xff]
        %v351 = vld [vmem:[%s135 + $0x610] sm:$0xff]
        %v352 = vld [vmem:[%s135 + $0x618] sm:$0xff]
        %v353 = vld [vmem:[%s135 + $0x620] sm:$0xff]
        %v354 = vld [vmem:[%s135 + $0x628] sm:$0xff]
        %v355 = vld [vmem:[%s135 + $0x630] sm:$0xff]
        %v356 = vld [vmem:[%s135 + $0x638] sm:$0xff]
        %v357 = vld [vmem:[%s135 + $0x640] sm:$0xff]
        %v358 = vld [vmem:[%s135 + $0x648] sm:$0xff]
        %v359 = vld [vmem:[%s135 + $0x650] sm:$0xff]
        %v360 = vld [vmem:[%s135 + $0x658] sm:$0xff]
        %v361 = vld [vmem:[%s135 + $0x660] sm:$0xff]
        %v362 = vld [vmem:[%s135 + $0x668] sm:$0xff]
        %v363 = vld [vmem:[%s135 + $0x670] sm:$0xff]
        %v364 = vld [vmem:[%s135 + $0x678] sm:$0xff]
        %v365 = vld [vmem:[%s135 + $0x680] sm:$0xff]
        %v366 = vld [vmem:[%s135 + $0x688] sm:$0xff]
        %v367 = vld [vmem:[%s135 + $0x690] sm:$0xff]
        %v368 = vld [vmem:[%s135 + $0x698] sm:$0xff]
        %v369 = vld [vmem:[%s135 + $0x6a0] sm:$0xff]
        %v370 = vld [vmem:[%s135 + $0x6a8] sm:$0xff]
        %v371 = vld [vmem:[%s135 + $0x6b0] sm:$0xff]
        %v372 = vld [vmem:[%s135 + $0x6b8] sm:$0xff]
        %v373 = vld [vmem:[%s135 + $0x6c0] sm:$0xff]
        %v374 = vld [vmem:[%s135 + $0x6c8] sm:$0xff]
        %v375 = vld [vmem:[%s135 + $0x6d0] sm:$0xff]
        %v376 = vld [vmem:[%s135 + $0x6d8] sm:$0xff]
        %v377 = vld [vmem:[%s135 + $0x6e0] sm:$0xff]
        %v378 = vld [vmem:[%s135 + $0x6e8] sm:$0xff]
        %v379 = vld [vmem:[%s135 + $0x6f0] sm:$0xff]
        %v380 = vld [vmem:[%s135 + $0x6f8] sm:$0xff]
        %v381 = vld [vmem:[%s135 + $0x700] sm:$0xff]
        %v382 = vld [vmem:[%s135 + $0x708] sm:$0xff]
        %v383 = vld [vmem:[%s135 + $0x710] sm:$0xff]
        %v384 = vld [vmem:[%s135 + $0x718] sm:$0xff]
        %v385 = vld [vmem:[%s135 + $0x720] sm:$0xff]
        %v386 = vld [vmem:[%s135 + $0x728] sm:$0xff]
        %v387 = vld [vmem:[%s135 + $0x730] sm:$0xff]
        %v388 = vld [vmem:[%s135 + $0x738] sm:$0xff]
        %v389 = vld [vmem:[%s135 + $0x740] sm:$0xff]
        %v390 = vld [vmem:[%s135 + $0x748] sm:$0xff]
        %v391 = vld [vmem:[%s135 + $0x750] sm:$0xff]
        %v392 = vld [vmem:[%s135 + $0x758] sm:$0xff]
        %v393 = vld [vmem:[%s135 + $0x760] sm:$0xff]
        %v394 = vld [vmem:[%s135 + $0x768] sm:$0xff]
        %v395 = vld [vmem:[%s135 + $0x770] sm:$0xff]
        %v396 = vld [vmem:[%s135 + $0x778] sm:$0xff]
        %v397 = vld [vmem:[%s135 + $0x780] sm:$0xff]
        %v398 = vld [vmem:[%s135 + $0x788] sm:$0xff]
        %v399 = vld [vmem:[%s135 + $0x790] sm:$0xff]
        %v400 = vld [vmem:[%s135 + $0x798] sm:$0xff]
        %v401 = vld [vmem:[%s135 + $0x7a0] sm:$0xff]
        %v402 = vld [vmem:[%s135 + $0x7a8] sm:$0xff]
        %v403 = vld [vmem:[%s135 + $0x7b0] sm:$0xff]
        %v404 = vld [vmem:[%s135 + $0x7b8] sm:$0xff]
        %v405 = vld [vmem:[%s135 + $0x7c0] sm:$0xff]
        %v406 = vld [vmem:[%s135 + $0x7c8] sm:$0xff]
        %v407 = vld [vmem:[%s135 + $0x7d0] sm:$0xff]
        %v408 = vld [vmem:[%s135 + $0x7d8] sm:$0xff]
        %v409 = vld [vmem:[%s135 + $0x7e0] sm:$0xff]
        %v410 = vld [vmem:[%s135 + $0x7e8] sm:$0xff]
        %v411 = vld [vmem:[%s135 + $0x7f0] sm:$0xff]
        %v412 = vld [vmem:[%s135 + $0x7f8] sm:$0xff]
        %v413 = vld [vmem:[%s135 + $0x800] sm:$0xff]
        %v414 = vld [vmem:[%s135 + $0x808] sm:$0xff]
        %v415 = vld [vmem:[%s135 + $0x810] sm:$0xff]
        %v416 = vld [vmem:[%s135 + $0x818] sm:$0xff]
        %v417 = vld [vmem:[%s135 + $0x820] sm:$0xff]
        %v418 = vld [vmem:[%s135 + $0x828] sm:$0xff]
        %v419 = vld [vmem:[%s135 + $0x830] sm:$0xff]
        %v420 = vld [vmem:[%s135 + $0x838] sm:$0xff]
        %v421 = vld [vmem:[%s135 + $0x840] sm:$0xff]
        %v422 = vld [vmem:[%s135 + $0x848] sm:$0xff]
        %v423 = vld [vmem:[%s135 + $0x850] sm:$0xff]
        %v424 = vld [vmem:[%s135 + $0x858] sm:$0xff]
        %v425 = vld [vmem:[%s135 + $0x860] sm:$0xff]
        %v426 = vld [vmem:[%s135 + $0x868] sm:$0xff]
        %v427 = vld [vmem:[%s135 + $0x870] sm:$0xff]
        %v428 = vld [vmem:[%s135 + $0x878] sm:$0xff]
        %v429 = vld [vmem:[%s135 + $0x880] sm:$0xff]
        %v430 = vld [vmem:[%s135 + $0x888] sm:$0xff]
        %v431 = vld [vmem:[%s135 + $0x890] sm:$0xff]
        %v432 = vld [vmem:[%s135 + $0x898] sm:$0xff]
        %v433 = vld [vmem:[%s135 + $0x8a0] sm:$0xff]
        %v434 = vld [vmem:[%s135 + $0x8a8] sm:$0xff]
        %v435 = vld [vmem:[%s135 + $0x8b0] sm:$0xff]
        %v436 = vld [vmem:[%s135 + $0x8b8] sm:$0xff]
        %v437 = vld [vmem:[%s135 + $0x8c0] sm:$0xff]
        %v438 = vld [vmem:[%s135 + $0x8c8] sm:$0xff]
        %v439 = vld [vmem:[%s135 + $0x8d0] sm:$0xff]
        %v440 = vld [vmem:[%s135 + $0x8d8] sm:$0xff]
        %v441 = vld [vmem:[%s135 + $0x8e0] sm:$0xff]
        %v442 = vld [vmem:[%s135 + $0x8e8] sm:$0xff]
        %v443 = vld [vmem:[%s135 + $0x8f0] sm:$0xff]
        %v444 = vld [vmem:[%s135 + $0x8f8] sm:$0xff]
        %v445 = vld [vmem:[%s135 + $0x900] sm:$0xff]
        %v446 = vld [vmem:[%s135 + $0x908] sm:$0xff]
        %v447 = vld [vmem:[%s135 + $0x910] sm:$0xff]
        %v448 = vld [vmem:[%s135 + $0x918] sm:$0xff]
        %v449 = vld [vmem:[%s135 + $0x920] sm:$0xff]
        %v450 = vld [vmem:[%s135 + $0x928] sm:$0xff]
        %v451 = vld [vmem:[%s135 + $0x930] sm:$0xff]
        %v452 = vld [vmem:[%s135 + $0x938] sm:$0xff]
        %v453 = vld [vmem:[%s135 + $0x940] sm:$0xff]
        %v454 = vld [vmem:[%s135 + $0x948] sm:$0xff]
        %v455 = vld [vmem:[%s135 + $0x950] sm:$0xff]
        %v456 = vld [vmem:[%s135 + $0x958] sm:$0xff]
        %v457 = vld [vmem:[%s135 + $0x960] sm:$0xff]
        %v458 = vld [vmem:[%s135 + $0x968] sm:$0xff]
        %v459 = vld [vmem:[%s135 + $0x970] sm:$0xff]
        %v460 = vld [vmem:[%s135 + $0x978] sm:$0xff]
        %v461 = vld [vmem:[%s135 + $0x980] sm:$0xff]
        %v462 = vld [vmem:[%s135 + $0x988] sm:$0xff]
        %v463 = vld [vmem:[%s135 + $0x990] sm:$0xff]
        %v464 = vld [vmem:[%s135 + $0x998] sm:$0xff]
        %v465 = vld [vmem:[%s135 + $0x9a0] sm:$0xff]
        %v466 = vld [vmem:[%s135 + $0x9a8] sm:$0xff]
        %v467 = vld [vmem:[%s135 + $0x9b0] sm:$0xff]
        %v468 = vld [vmem:[%s135 + $0x9b8] sm:$0xff]
        %v469 = vld [vmem:[%s135 + $0x9c0] sm:$0xff]
        %v470 = vld [vmem:[%s135 + $0x9c8] sm:$0xff]
        %v471 = vld [vmem:[%s135 + $0x9d0] sm:$0xff]
        %v472 = vld [vmem:[%s135 + $0x9d8] sm:$0xff]
        %v473 = vld [vmem:[%s135 + $0x9e0] sm:$0xff]
        %v474 = vld [vmem:[%s135 + $0x9e8] sm:$0xff]
        %v475 = vld [vmem:[%s135 + $0x9f0] sm:$0xff]
        %v476 = vld [vmem:[%s135 + $0x9f8] sm:$0xff]
        %v477 = vld [vmem:[%s135 + $0xa00] sm:$0xff]
        %v478 = vld [vmem:[%s135 + $0xa08] sm:$0xff]
        %v479 = vld [vmem:[%s135 + $0xa10] sm:$0xff]
        %v480 = vld [vmem:[%s135 + $0xa18] sm:$0xff]
        %v481 = vld [vmem:[%s135 + $0xa20] sm:$0xff]
        %v482 = vld [vmem:[%s135 + $0xa28] sm:$0xff]
        %v483 = vld [vmem:[%s135 + $0xa30] sm:$0xff]
        %v484 = vld [vmem:[%s135 + $0xa38] sm:$0xff]
        %v485 = vld [vmem:[%s135 + $0xa40] sm:$0xff]
        %v486 = vld [vmem:[%s135 + $0xa48] sm:$0xff]
        %v487 = vld [vmem:[%s135 + $0xa50] sm:$0xff]
        %v488 = vld [vmem:[%s135 + $0xa58] sm:$0xff]
        %v489 = vld [vmem:[%s135 + $0xa60] sm:$0xff]
        %v490 = vld [vmem:[%s135 + $0xa68] sm:$0xff]
        %v491 = vld [vmem:[%s135 + $0xa70] sm:$0xff]
        %v492 = vld [vmem:[%s135 + $0xa78] sm:$0xff]
        %v493 = vld [vmem:[%s135 + $0xa80] sm:$0xff]
        %v494 = vld [vmem:[%s135 + $0xa88] sm:$0xff]
        %v495 = vld [vmem:[%s135 + $0xa90] sm:$0xff]
        %v496 = vld [vmem:[%s135 + $0xa98] sm:$0xff]
        %v497 = vld [vmem:[%s135 + $0xaa0] sm:$0xff]
        %v498 = vld [vmem:[%s135 + $0xaa8] sm:$0xff]
        %v499 = vld [vmem:[%s135 + $0xab0] sm:$0xff]
        %v500 = vld [vmem:[%s135 + $0xab8] sm:$0xff]
        %v501 = vld [vmem:[%s135 + $0xac0] sm:$0xff]
        %v502 = vld [vmem:[%s135 + $0xac8] sm:$0xff]
        %v503 = vld [vmem:[%s135 + $0xad0] sm:$0xff]
        %v504 = vld [vmem:[%s135 + $0xad8] sm:$0xff]
        %v505 = vld [vmem:[%s135 + $0xae0] sm:$0xff]
        %v506 = vld [vmem:[%s135 + $0xae8] sm:$0xff]
        %v507 = vld [vmem:[%s135 + $0xaf0] sm:$0xff]
        %v508 = vld [vmem:[%s135 + $0xaf8] sm:$0xff]
        %v509 = vld [vmem:[%s135 + $0xb00] sm:$0xff]
        %v510 = vld [vmem:[%s135 + $0xb08] sm:$0xff]
        %v511 = vld [vmem:[%s135 + $0xb10] sm:$0xff]
        %v512 = vld [vmem:[%s135 + $0xb18] sm:$0xff]
        %v513 = vld [vmem:[%s135 + $0xb20] sm:$0xff]
        %v514 = vld [vmem:[%s135 + $0xb28] sm:$0xff]
        %v515 = vld [vmem:[%s135 + $0xb30] sm:$0xff]
        %v516 = vld [vmem:[%s135 + $0xb38] sm:$0xff]
        %v517 = vld [vmem:[%s135 + $0xb40] sm:$0xff]
        %v518 = vld [vmem:[%s135 + $0xb48] sm:$0xff]
        %v519 = vld [vmem:[%s135 + $0xb50] sm:$0xff]
        %v520 = vld [vmem:[%s135 + $0xb58] sm:$0xff]
        %v521 = vld [vmem:[%s135 + $0xb60] sm:$0xff]
        %v522 = vld [vmem:[%s135 + $0xb68] sm:$0xff]
        %v523 = vld [vmem:[%s135 + $0xb70] sm:$0xff]
        %v524 = vld [vmem:[%s135 + $0xb78] sm:$0xff]
        %v525 = vld [vmem:[%s135 + $0xb80] sm:$0xff]
        %v526 = vld [vmem:[%s135 + $0xb88] sm:$0xff]
        %v527 = vld [vmem:[%s135 + $0xb90] sm:$0xff]
        %v528 = vld [vmem:[%s135 + $0xb98] sm:$0xff]
        %v529 = vld [vmem:[%s135 + $0xba0] sm:$0xff]
        %v530 = vld [vmem:[%s135 + $0xba8] sm:$0xff]
        %v531 = vld [vmem:[%s135 + $0xbb0] sm:$0xff]
        %v532 = vld [vmem:[%s135 + $0xbb8] sm:$0xff]
        %v533 = vld [vmem:[%s135 + $0xbc0] sm:$0xff]
        %v534 = vld [vmem:[%s135 + $0xbc8] sm:$0xff]
        %v535 = vld [vmem:[%s135 + $0xbd0] sm:$0xff]
        %v536 = vld [vmem:[%s135 + $0xbd8] sm:$0xff]
        %v537 = vld [vmem:[%s135 + $0xbe0] sm:$0xff]
        %v538 = vld [vmem:[%s135 + $0xbe8] sm:$0xff]
        %v539 = vld [vmem:[%s135 + $0xbf0] sm:$0xff]
        %v540 = vld [vmem:[%s135 + $0xbf8] sm:$0xff]
        %v541 = vld [vmem:[%s135 + $0xc00] sm:$0xff]
        %v542 = vld [vmem:[%s135 + $0xc08] sm:$0xff]
        %v543 = vld [vmem:[%s135 + $0xc10] sm:$0xff]
        %v544 = vld [vmem:[%s135 + $0xc18] sm:$0xff]
        %v545 = vld [vmem:[%s135 + $0xc20] sm:$0xff]
        %v546 = vld [vmem:[%s135 + $0xc28] sm:$0xff]
        %v547 = vld [vmem:[%s135 + $0xc30] sm:$0xff]
        %v548 = vld [vmem:[%s135 + $0xc38] sm:$0xff]
        %v549 = vld [vmem:[%s135 + $0xc40] sm:$0xff]
        %v550 = vld [vmem:[%s135 + $0xc48] sm:$0xff]
        %v551 = vld [vmem:[%s135 + $0xc50] sm:$0xff]
        %v552 = vld [vmem:[%s135 + $0xc58] sm:$0xff]
        %v553 = vld [vmem:[%s135 + $0xc60] sm:$0xff]
        %v554 = vld [vmem:[%s135 + $0xc68] sm:$0xff]
        %v555 = vld [vmem:[%s135 + $0xc70] sm:$0xff]
        %v556 = vld [vmem:[%s135 + $0xc78] sm:$0xff]
        %v557 = vld [vmem:[%s135 + $0xc80] sm:$0xff]
        %v558 = vld [vmem:[%s135 + $0xc88] sm:$0xff]
        %v559 = vld [vmem:[%s135 + $0xc90] sm:$0xff]
        %v560 = vld [vmem:[%s135 + $0xc98] sm:$0xff]
        %v561 = vld [vmem:[%s135 + $0xca0] sm:$0xff]
        %v562 = vld [vmem:[%s135 + $0xca8] sm:$0xff]
        %v563 = vld [vmem:[%s135 + $0xcb0] sm:$0xff]
        %v564 = vld [vmem:[%s135 + $0xcb8] sm:$0xff]
        %v565 = vld [vmem:[%s135 + $0xcc0] sm:$0xff]
        %v566 = vld [vmem:[%s135 + $0xcc8] sm:$0xff]
        %v567 = vld [vmem:[%s135 + $0xcd0] sm:$0xff]
        %v568 = vld [vmem:[%s135 + $0xcd8] sm:$0xff]
        %v569 = vld [vmem:[%s135 + $0xce0] sm:$0xff]
        %v570 = vld [vmem:[%s135 + $0xce8] sm:$0xff]
        %v571 = vld [vmem:[%s135 + $0xcf0] sm:$0xff]
        %v572 = vld [vmem:[%s135 + $0xcf8] sm:$0xff]
        %v573 = vld [vmem:[%s135 + $0xd00] sm:$0xff]
        %v574 = vld [vmem:[%s135 + $0xd08] sm:$0xff]
        %v575 = vld [vmem:[%s135 + $0xd10] sm:$0xff]
        %v576 = vld [vmem:[%s135 + $0xd18] sm:$0xff]
        %v577 = vld [vmem:[%s135 + $0xd20] sm:$0xff]
        %v578 = vld [vmem:[%s135 + $0xd28] sm:$0xff]
        %v579 = vld [vmem:[%s135 + $0xd30] sm:$0xff]
        %v580 = vld [vmem:[%s135 + $0xd38] sm:$0xff]
        %v581 = vld [vmem:[%s135 + $0xd40] sm:$0xff]
        %v582 = vld [vmem:[%s135 + $0xd48] sm:$0xff]
        %v583 = vld [vmem:[%s135 + $0xd50] sm:$0xff]
        %v584 = vld [vmem:[%s135 + $0xd58] sm:$0xff]
        %v585 = vld [vmem:[%s135 + $0xd60] sm:$0xff]
        %v586 = vld [vmem:[%s135 + $0xd68] sm:$0xff]
        %v587 = vld [vmem:[%s135 + $0xd70] sm:$0xff]
        %v588 = vld [vmem:[%s135 + $0xd78] sm:$0xff]
        %v589 = vld [vmem:[%s135 + $0xd80] sm:$0xff]
        %v590 = vld [vmem:[%s135 + $0xd88] sm:$0xff]
        %v591 = vld [vmem:[%s135 + $0xd90] sm:$0xff]
        %v592 = vld [vmem:[%s135 + $0xd98] sm:$0xff]
        %v593 = vld [vmem:[%s135 + $0xda0] sm:$0xff]
        %v594 = vld [vmem:[%s135 + $0xda8] sm:$0xff]
        %v595 = vld [vmem:[%s135 + $0xdb0] sm:$0xff]
        %v596 = vld [vmem:[%s135 + $0xdb8] sm:$0xff]
        %v597 = vld [vmem:[%s135 + $0xdc0] sm:$0xff]
        %v598 = vld [vmem:[%s135 + $0xdc8] sm:$0xff]
        %v599 = vld [vmem:[%s135 + $0xdd0] sm:$0xff]
        %v600 = vld [vmem:[%s135 + $0xdd8] sm:$0xff]
        %v601 = vld [vmem:[%s135 + $0xde0] sm:$0xff]
        %v602 = vld [vmem:[%s135 + $0xde8] sm:$0xff]
        %v603 = vld [vmem:[%s135 + $0xdf0] sm:$0xff]
        %v604 = vld [vmem:[%s135 + $0xdf8] sm:$0xff]
        %v605 = vld [vmem:[%s135 + $0xe00] sm:$0xff]
        %v606 = vld [vmem:[%s135 + $0xe08] sm:$0xff]
        %v607 = vld [vmem:[%s135 + $0xe10] sm:$0xff]
        %v608 = vld [vmem:[%s135 + $0xe18] sm:$0xff]
        %v609 = vld [vmem:[%s135 + $0xe20] sm:$0xff]
        %v610 = vld [vmem:[%s135 + $0xe28] sm:$0xff]
        %v611 = vld [vmem:[%s135 + $0xe30] sm:$0xff]
        %v612 = vld [vmem:[%s135 + $0xe38] sm:$0xff]
        %v613 = vld [vmem:[%s135 + $0xe40] sm:$0xff]
        %v614 = vld [vmem:[%s135 + $0xe48] sm:$0xff]
        %v615 = vld [vmem:[%s135 + $0xe50] sm:$0xff]
        %v616 = vld [vmem:[%s135 + $0xe58] sm:$0xff]
        %v617 = vld [vmem:[%s135 + $0xe60] sm:$0xff]
        %v618 = vld [vmem:[%s135 + $0xe68] sm:$0xff]
        %v619 = vld [vmem:[%s135 + $0xe70] sm:$0xff]
        %v620 = vld [vmem:[%s135 + $0xe78] sm:$0xff]
        %v621 = vld [vmem:[%s135 + $0xe80] sm:$0xff]
        %v622 = vld [vmem:[%s135 + $0xe88] sm:$0xff]
        %v623 = vld [vmem:[%s135 + $0xe90] sm:$0xff]
        %v624 = vld [vmem:[%s135 + $0xe98] sm:$0xff]
        %v625 = vld [vmem:[%s135 + $0xea0] sm:$0xff]
        %v626 = vld [vmem:[%s135 + $0xea8] sm:$0xff]
        %v627 = vld [vmem:[%s135 + $0xeb0] sm:$0xff]
        %v628 = vld [vmem:[%s135 + $0xeb8] sm:$0xff]
        %v629 = vld [vmem:[%s135 + $0xec0] sm:$0xff]
        %v630 = vld [vmem:[%s135 + $0xec8] sm:$0xff]
        %v631 = vld [vmem:[%s135 + $0xed0] sm:$0xff]
        %v632 = vld [vmem:[%s135 + $0xed8] sm:$0xff]
        %v633 = vld [vmem:[%s135 + $0xee0] sm:$0xff]
        %v634 = vld [vmem:[%s135 + $0xee8] sm:$0xff]
        %v635 = vld [vmem:[%s135 + $0xef0] sm:$0xff]
        %v636 = vld [vmem:[%s135 + $0xef8] sm:$0xff]
        %v637 = vld [vmem:[%s135 + $0xf00] sm:$0xff]
        %v638 = vld [vmem:[%s135 + $0xf08] sm:$0xff]
        %v639 = vld [vmem:[%s135 + $0xf10] sm:$0xff]
        %v640 = vld [vmem:[%s135 + $0xf18] sm:$0xff]
        %v641 = vld [vmem:[%s135 + $0xf20] sm:$0xff]
        %v642 = vld [vmem:[%s135 + $0xf28] sm:$0xff]
        %v643 = vld [vmem:[%s135 + $0xf30] sm:$0xff]
        %v644 = vld [vmem:[%s135 + $0xf38] sm:$0xff]
        %v645 = vld [vmem:[%s135 + $0xf40] sm:$0xff]
        %v646 = vld [vmem:[%s135 + $0xf48] sm:$0xff]
        %v647 = vld [vmem:[%s135 + $0xf50] sm:$0xff]
        %v648 = vld [vmem:[%s135 + $0xf58] sm:$0xff]
        %v649 = vld [vmem:[%s135 + $0xf60] sm:$0xff]
        %v650 = vld [vmem:[%s135 + $0xf68] sm:$0xff]
        %v651 = vld [vmem:[%s135 + $0xf70] sm:$0xff]
        %v652 = vld [vmem:[%s135 + $0xf78] sm:$0xff]
        %v653 = vld [vmem:[%s135 + $0xf80] sm:$0xff]
        %v654 = vld [vmem:[%s135 + $0xf88] sm:$0xff]
        %v655 = vld [vmem:[%s135 + $0xf90] sm:$0xff]
        %v656 = vld [vmem:[%s135 + $0xf98] sm:$0xff]
        %v657 = vld [vmem:[%s135 + $0xfa0] sm:$0xff]
        %v658 = vld [vmem:[%s135 + $0xfa8] sm:$0xff]
        %v659 = vld [vmem:[%s135 + $0xfb0] sm:$0xff]
        %v660 = vld [vmem:[%s135 + $0xfb8] sm:$0xff]
        %v661 = vld [vmem:[%s135 + $0xfc0] sm:$0xff]
        %v662 = vld [vmem:[%s135 + $0xfc8] sm:$0xff]
        %v663 = vld [vmem:[%s135 + $0xfd0] sm:$0xff]
        %v664 = vld [vmem:[%s135 + $0xfd8] sm:$0xff]
        %v665 = vld [vmem:[%s135 + $0xfe0] sm:$0xff]
        %v666 = vld [vmem:[%s135 + $0xfe8] sm:$0xff]
        %v667 = vld [vmem:[%s135 + $0xff0] sm:$0xff]
        %v668 = vld [vmem:[%s135 + $0xff8] sm:$0xff]
        %v669 = vmax.f32 %v157, %v159
        %v670 = vmax.f32 %v669, %v161
        %v671 = vmax.f32 %v670, %v163
        %v672 = vmax.f32 %v671, %v165
        %v673 = vmax.f32 %v672, %v167
        %v674 = vmax.f32 %v673, %v169
        %v675 = vmax.f32 %v674, %v171
        %v676 = vmax.f32 %v675, %v173
        %v677 = vmax.f32 %v676, %v175
        %v678 = vmax.f32 %v677, %v177
        %v679 = vmax.f32 %v678, %v179
        %v680 = vmax.f32 %v679, %v181
        %v681 = vmax.f32 %v680, %v183
        %v682 = vmax.f32 %v681, %v185
        %v683 = vmax.f32 %v682, %v187
        %v684 = vmax.f32 %v683, %v189
        %v685 = vmax.f32 %v684, %v191
        %v686 = vmax.f32 %v685, %v193
        %v687 = vmax.f32 %v686, %v195
        %v688 = vmax.f32 %v687, %v197
        %v689 = vmax.f32 %v688, %v199
        %v690 = vmax.f32 %v689, %v201
        %v691 = vmax.f32 %v690, %v203
        %v692 = vmax.f32 %v691, %v205
        %v693 = vmax.f32 %v692, %v207
        %v694 = vmax.f32 %v693, %v209
        %v695 = vmax.f32 %v694, %v211
        %v696 = vmax.f32 %v695, %v213
        %v697 = vmax.f32 %v696, %v215
        %v698 = vmax.f32 %v697, %v217
        %v699 = vmax.f32 %v698, %v219
        %v700 = vrot.slane %v699, 4
        %v701 = vmax.f32 %v699, %v700
        %v702 = vrot.slane %v701, 2
        %v703 = vmax.f32 %v701, %v702
        %v704 = vrot.slane %v703, 1
        %v705 = vmax.f32 %v703, %v704
        %v706 = vmax.f32 %v158, %v160
        %v707 = vmax.f32 %v706, %v162
        %v708 = vmax.f32 %v707, %v164
        %v709 = vmax.f32 %v708, %v166
        %v710 = vmax.f32 %v709, %v168
        %v711 = vmax.f32 %v710, %v170
        %v712 = vmax.f32 %v711, %v172
        %v713 = vmax.f32 %v712, %v174
        %v714 = vmax.f32 %v713, %v176
        %v715 = vmax.f32 %v714, %v178
        %v716 = vmax.f32 %v715, %v180
        %v717 = vmax.f32 %v716, %v182
        %v718 = vmax.f32 %v717, %v184
        %v719 = vmax.f32 %v718, %v186
        %v720 = vmax.f32 %v719, %v188
        %v721 = vmax.f32 %v720, %v190
        %v722 = vmax.f32 %v721, %v192
        %v723 = vmax.f32 %v722, %v194
        %v724 = vmax.f32 %v723, %v196
        %v725 = vmax.f32 %v724, %v198
        %v726 = vmax.f32 %v725, %v200
        %v727 = vmax.f32 %v726, %v202
        %v728 = vmax.f32 %v727, %v204
        %v729 = vmax.f32 %v728, %v206
        %v730 = vmax.f32 %v729, %v208
        %v731 = vmax.f32 %v730, %v210
        %v732 = vmax.f32 %v731, %v212
        %v733 = vmax.f32 %v732, %v214
        %v734 = vmax.f32 %v733, %v216
        %v735 = vmax.f32 %v734, %v218
        %v736 = vmax.f32 %v735, %v220
        %v737 = vrot.slane %v736, 4
        %v738 = vmax.f32 %v736, %v737
        %v739 = vrot.slane %v738, 2
        %v740 = vmax.f32 %v738, %v739
        %v741 = vrot.slane %v740, 1
        %v742 = vmax.f32 %v740, %v741
        %v743 = vmax.f32 %v221, %v223
        %v744 = vmax.f32 %v743, %v225
        %v745 = vmax.f32 %v744, %v227
        %v746 = vmax.f32 %v745, %v229
        %v747 = vmax.f32 %v746, %v231
        %v748 = vmax.f32 %v747, %v233
        %v749 = vmax.f32 %v748, %v235
        %v750 = vmax.f32 %v749, %v237
        %v751 = vmax.f32 %v750, %v239
        %v752 = vmax.f32 %v751, %v241
        %v753 = vmax.f32 %v752, %v243
        %v754 = vmax.f32 %v753, %v245
        %v755 = vmax.f32 %v754, %v247
        %v756 = vmax.f32 %v755, %v249
        %v757 = vmax.f32 %v756, %v251
        %v758 = vmax.f32 %v757, %v253
        %v759 = vmax.f32 %v758, %v255
        %v760 = vmax.f32 %v759, %v257
        %v761 = vmax.f32 %v760, %v259
        %v762 = vmax.f32 %v761, %v261
        %v763 = vmax.f32 %v762, %v263
        %v764 = vmax.f32 %v763, %v265
        %v765 = vmax.f32 %v764, %v267
        %v766 = vmax.f32 %v765, %v269
        %v767 = vmax.f32 %v766, %v271
        %v768 = vmax.f32 %v767, %v273
        %v769 = vmax.f32 %v768, %v275
        %v770 = vmax.f32 %v769, %v277
        %v771 = vmax.f32 %v770, %v279
        %v772 = vmax.f32 %v771, %v281
        %v773 = vmax.f32 %v772, %v283
        %v774 = vrot.slane %v773, 4
        %v775 = vmax.f32 %v773, %v774
        %v776 = vrot.slane %v775, 2
        %v777 = vmax.f32 %v775, %v776
        %v778 = vrot.slane %v777, 1
        %v779 = vmax.f32 %v777, %v778
        %v780 = vmax.f32 %v222, %v224
        %v781 = vmax.f32 %v780, %v226
        %v782 = vmax.f32 %v781, %v228
        %v783 = vmax.f32 %v782, %v230
        %v784 = vmax.f32 %v783, %v232
        %v785 = vmax.f32 %v784, %v234
        %v786 = vmax.f32 %v785, %v236
        %v787 = vmax.f32 %v786, %v238
        %v788 = vmax.f32 %v787, %v240
        %v789 = vmax.f32 %v788, %v242
        %v790 = vmax.f32 %v789, %v244
        %v791 = vmax.f32 %v790, %v246
        %v792 = vmax.f32 %v791, %v248
        %v793 = vmax.f32 %v792, %v250
        %v794 = vmax.f32 %v793, %v252
        %v795 = vmax.f32 %v794, %v254
        %v796 = vmax.f32 %v795, %v256
        %v797 = vmax.f32 %v796, %v258
        %v798 = vmax.f32 %v797, %v260
        %v799 = vmax.f32 %v798, %v262
        %v800 = vmax.f32 %v799, %v264
        %v801 = vmax.f32 %v800, %v266
        %v802 = vmax.f32 %v801, %v268
        %v803 = vmax.f32 %v802, %v270
        %v804 = vmax.f32 %v803, %v272
        %v805 = vmax.f32 %v804, %v274
        %v806 = vmax.f32 %v805, %v276
        %v807 = vmax.f32 %v806, %v278
        %v808 = vmax.f32 %v807, %v280
        %v809 = vmax.f32 %v808, %v282
        %v810 = vmax.f32 %v809, %v284
        %v811 = vrot.slane %v810, 4
        %v812 = vmax.f32 %v810, %v811
        %v813 = vrot.slane %v812, 2
        %v814 = vmax.f32 %v812, %v813
        %v815 = vrot.slane %v814, 1
        %v816 = vmax.f32 %v814, %v815
        %v817 = vmax.f32 %v285, %v287
        %v818 = vmax.f32 %v817, %v289
        %v819 = vmax.f32 %v818, %v291
        %v820 = vmax.f32 %v819, %v293
        %v821 = vmax.f32 %v820, %v295
        %v822 = vmax.f32 %v821, %v297
        %v823 = vmax.f32 %v822, %v299
        %v824 = vmax.f32 %v823, %v301
        %v825 = vmax.f32 %v824, %v303
        %v826 = vmax.f32 %v825, %v305
        %v827 = vmax.f32 %v826, %v307
        %v828 = vmax.f32 %v827, %v309
        %v829 = vmax.f32 %v828, %v311
        %v830 = vmax.f32 %v829, %v313
        %v831 = vmax.f32 %v830, %v315
        %v832 = vmax.f32 %v831, %v317
        %v833 = vmax.f32 %v832, %v319
        %v834 = vmax.f32 %v833, %v321
        %v835 = vmax.f32 %v834, %v323
        %v836 = vmax.f32 %v835, %v325
        %v837 = vmax.f32 %v836, %v327
        %v838 = vmax.f32 %v837, %v329
        %v839 = vmax.f32 %v838, %v331
        %v840 = vmax.f32 %v839, %v333
        %v841 = vmax.f32 %v840, %v335
        %v842 = vmax.f32 %v841, %v337
        %v843 = vmax.f32 %v842, %v339
        %v844 = vmax.f32 %v843, %v341
        %v845 = vmax.f32 %v844, %v343
        %v846 = vmax.f32 %v845, %v345
        %v847 = vmax.f32 %v846, %v347
        %v848 = vrot.slane %v847, 4
        %v849 = vmax.f32 %v847, %v848
        %v850 = vrot.slane %v849, 2
        %v851 = vmax.f32 %v849, %v850
        %v852 = vrot.slane %v851, 1
        %v853 = vmax.f32 %v851, %v852
        %v854 = vmax.f32 %v286, %v288
        %v855 = vmax.f32 %v854, %v290
        %v856 = vmax.f32 %v855, %v292
        %v857 = vmax.f32 %v856, %v294
        %v858 = vmax.f32 %v857, %v296
        %v859 = vmax.f32 %v858, %v298
        %v860 = vmax.f32 %v859, %v300
        %v861 = vmax.f32 %v860, %v302
        %v862 = vmax.f32 %v861, %v304
        %v863 = vmax.f32 %v862, %v306
        %v864 = vmax.f32 %v863, %v308
        %v865 = vmax.f32 %v864, %v310
        %v866 = vmax.f32 %v865, %v312
        %v867 = vmax.f32 %v866, %v314
        %v868 = vmax.f32 %v867, %v316
        %v869 = vmax.f32 %v868, %v318
        %v870 = vmax.f32 %v869, %v320
        %v871 = vmax.f32 %v870, %v322
        %v872 = vmax.f32 %v871, %v324
        %v873 = vmax.f32 %v872, %v326
        %v874 = vmax.f32 %v873, %v328
        %v875 = vmax.f32 %v874, %v330
        %v876 = vmax.f32 %v875, %v332
        %v877 = vmax.f32 %v876, %v334
        %v878 = vmax.f32 %v877, %v336
        %v879 = vmax.f32 %v878, %v338
        %v880 = vmax.f32 %v879, %v340
        %v881 = vmax.f32 %v880, %v342
        %v882 = vmax.f32 %v881, %v344
        %v883 = vmax.f32 %v882, %v346
        %v884 = vmax.f32 %v883, %v348
        %v885 = vrot.slane %v884, 4
        %v886 = vmax.f32 %v884, %v885
        %v887 = vrot.slane %v886, 2
        %v888 = vmax.f32 %v886, %v887
        %v889 = vrot.slane %v888, 1
        %v890 = vmax.f32 %v888, %v889
        %v891 = vmax.f32 %v349, %v351
        %v892 = vmax.f32 %v891, %v353
        %v893 = vmax.f32 %v892, %v355
        %v894 = vmax.f32 %v893, %v357
        %v895 = vmax.f32 %v894, %v359
        %v896 = vmax.f32 %v895, %v361
        %v897 = vmax.f32 %v896, %v363
        %v898 = vmax.f32 %v897, %v365
        %v899 = vmax.f32 %v898, %v367
        %v900 = vmax.f32 %v899, %v369
        %v901 = vmax.f32 %v900, %v371
        %v902 = vmax.f32 %v901, %v373
        %v903 = vmax.f32 %v902, %v375
        %v904 = vmax.f32 %v903, %v377
        %v905 = vmax.f32 %v904, %v379
        %v906 = vmax.f32 %v905, %v381
        %v907 = vmax.f32 %v906, %v383
        %v908 = vmax.f32 %v907, %v385
        %v909 = vmax.f32 %v908, %v387
        %v910 = vmax.f32 %v909, %v389
        %v911 = vmax.f32 %v910, %v391
        %v912 = vmax.f32 %v911, %v393
        %v913 = vmax.f32 %v912, %v395
        %v914 = vmax.f32 %v913, %v397
        %v915 = vmax.f32 %v914, %v399
        %v916 = vmax.f32 %v915, %v401
        %v917 = vmax.f32 %v916, %v403
        %v918 = vmax.f32 %v917, %v405
        %v919 = vmax.f32 %v918, %v407
        %v920 = vmax.f32 %v919, %v409
        %v921 = vmax.f32 %v920, %v411
        %v922 = vrot.slane %v921, 4
        %v923 = vmax.f32 %v921, %v922
        %v924 = vrot.slane %v923, 2
        %v925 = vmax.f32 %v923, %v924
        %v926 = vrot.slane %v925, 1
        %v927 = vmax.f32 %v925, %v926
        %v928 = vmax.f32 %v350, %v352
        %v929 = vmax.f32 %v928, %v354
        %v930 = vmax.f32 %v929, %v356
        %v931 = vmax.f32 %v930, %v358
        %v932 = vmax.f32 %v931, %v360
        %v933 = vmax.f32 %v932, %v362
        %v934 = vmax.f32 %v933, %v364
        %v935 = vmax.f32 %v934, %v366
        %v936 = vmax.f32 %v935, %v368
        %v937 = vmax.f32 %v936, %v370
        %v938 = vmax.f32 %v937, %v372
        %v939 = vmax.f32 %v938, %v374
        %v940 = vmax.f32 %v939, %v376
        %v941 = vmax.f32 %v940, %v378
        %v942 = vmax.f32 %v941, %v380
        %v943 = vmax.f32 %v942, %v382
        %v944 = vmax.f32 %v943, %v384
        %v945 = vmax.f32 %v944, %v386
        %v946 = vmax.f32 %v945, %v388
        %v947 = vmax.f32 %v946, %v390
        %v948 = vmax.f32 %v947, %v392
        %v949 = vmax.f32 %v948, %v394
        %v950 = vmax.f32 %v949, %v396
        %v951 = vmax.f32 %v950, %v398
        %v952 = vmax.f32 %v951, %v400
        %v953 = vmax.f32 %v952, %v402
        %v954 = vmax.f32 %v953, %v404
        %v955 = vmax.f32 %v954, %v406
        %v956 = vmax.f32 %v955, %v408
        %v957 = vmax.f32 %v956, %v410
        %v958 = vmax.f32 %v957, %v412
        %v959 = vrot.slane %v958, 4
        %v960 = vmax.f32 %v958, %v959
        %v961 = vrot.slane %v960, 2
        %v962 = vmax.f32 %v960, %v961
        %v963 = vrot.slane %v962, 1
        %v964 = vmax.f32 %v962, %v963
        %v965 = vmax.f32 %v413, %v415
        %v966 = vmax.f32 %v965, %v417
        %v967 = vmax.f32 %v966, %v419
        %v968 = vmax.f32 %v967, %v421
        %v969 = vmax.f32 %v968, %v423
        %v970 = vmax.f32 %v969, %v425
        %v971 = vmax.f32 %v970, %v427
        %v972 = vmax.f32 %v971, %v429
        %v973 = vmax.f32 %v972, %v431
        %v974 = vmax.f32 %v973, %v433
        %v975 = vmax.f32 %v974, %v435
        %v976 = vmax.f32 %v975, %v437
        %v977 = vmax.f32 %v976, %v439
        %v978 = vmax.f32 %v977, %v441
        %v979 = vmax.f32 %v978, %v443
        %v980 = vmax.f32 %v979, %v445
        %v981 = vmax.f32 %v980, %v447
        %v982 = vmax.f32 %v981, %v449
        %v983 = vmax.f32 %v982, %v451
        %v984 = vmax.f32 %v983, %v453
        %v985 = vmax.f32 %v984, %v455
        %v986 = vmax.f32 %v985, %v457
        %v987 = vmax.f32 %v986, %v459
        %v988 = vmax.f32 %v987, %v461
        %v989 = vmax.f32 %v988, %v463
        %v990 = vmax.f32 %v989, %v465
        %v991 = vmax.f32 %v990, %v467
        %v992 = vmax.f32 %v991, %v469
        %v993 = vmax.f32 %v992, %v471
        %v994 = vmax.f32 %v993, %v473
        %v995 = vmax.f32 %v994, %v475
        %v996 = vrot.slane %v995, 4
        %v997 = vmax.f32 %v995, %v996
        %v998 = vrot.slane %v997, 2
        %v999 = vmax.f32 %v997, %v998
        %v1000 = vrot.slane %v999, 1
        %v1001 = vmax.f32 %v999, %v1000
        %v1002 = vmax.f32 %v414, %v416
        %v1003 = vmax.f32 %v1002, %v418
        %v1004 = vmax.f32 %v1003, %v420
        %v1005 = vmax.f32 %v1004, %v422
        %v1006 = vmax.f32 %v1005, %v424
        %v1007 = vmax.f32 %v1006, %v426
        %v1008 = vmax.f32 %v1007, %v428
        %v1009 = vmax.f32 %v1008, %v430
        %v1010 = vmax.f32 %v1009, %v432
        %v1011 = vmax.f32 %v1010, %v434
        %v1012 = vmax.f32 %v1011, %v436
        %v1013 = vmax.f32 %v1012, %v438
        %v1014 = vmax.f32 %v1013, %v440
        %v1015 = vmax.f32 %v1014, %v442
        %v1016 = vmax.f32 %v1015, %v444
        %v1017 = vmax.f32 %v1016, %v446
        %v1018 = vmax.f32 %v1017, %v448
        %v1019 = vmax.f32 %v1018, %v450
        %v1020 = vmax.f32 %v1019, %v452
        %v1021 = vmax.f32 %v1020, %v454
        %v1022 = vmax.f32 %v1021, %v456
        %v1023 = vmax.f32 %v1022, %v458
        %v1024 = vmax.f32 %v1023, %v460
        %v1025 = vmax.f32 %v1024, %v462
        %v1026 = vmax.f32 %v1025, %v464
        %v1027 = vmax.f32 %v1026, %v466
        %v1028 = vmax.f32 %v1027, %v468
        %v1029 = vmax.f32 %v1028, %v470
        %v1030 = vmax.f32 %v1029, %v472
        %v1031 = vmax.f32 %v1030, %v474
        %v1032 = vmax.f32 %v1031, %v476
        %v1033 = vrot.slane %v1032, 4
        %v1034 = vmax.f32 %v1032, %v1033
        %v1035 = vrot.slane %v1034, 2
        %v1036 = vmax.f32 %v1034, %v1035
        %v1037 = vrot.slane %v1036, 1
        %v1038 = vmax.f32 %v1036, %v1037
        %v1039 = vmax.f32 %v477, %v479
        %v1040 = vmax.f32 %v1039, %v481
        %v1041 = vmax.f32 %v1040, %v483
        %v1042 = vmax.f32 %v1041, %v485
        %v1043 = vmax.f32 %v1042, %v487
        %v1044 = vmax.f32 %v1043, %v489
        %v1045 = vmax.f32 %v1044, %v491
        %v1046 = vmax.f32 %v1045, %v493
        %v1047 = vmax.f32 %v1046, %v495
        %v1048 = vmax.f32 %v1047, %v497
        %v1049 = vmax.f32 %v1048, %v499
        %v1050 = vmax.f32 %v1049, %v501
        %v1051 = vmax.f32 %v1050, %v503
        %v1052 = vmax.f32 %v1051, %v505
        %v1053 = vmax.f32 %v1052, %v507
        %v1054 = vmax.f32 %v1053, %v509
        %v1055 = vmax.f32 %v1054, %v511
        %v1056 = vmax.f32 %v1055, %v513
        %v1057 = vmax.f32 %v1056, %v515
        %v1058 = vmax.f32 %v1057, %v517
        %v1059 = vmax.f32 %v1058, %v519
        %v1060 = vmax.f32 %v1059, %v521
        %v1061 = vmax.f32 %v1060, %v523
        %v1062 = vmax.f32 %v1061, %v525
        %v1063 = vmax.f32 %v1062, %v527
        %v1064 = vmax.f32 %v1063, %v529
        %v1065 = vmax.f32 %v1064, %v531
        %v1066 = vmax.f32 %v1065, %v533
        %v1067 = vmax.f32 %v1066, %v535
        %v1068 = vmax.f32 %v1067, %v537
        %v1069 = vmax.f32 %v1068, %v539
        %v1070 = vrot.slane %v1069, 4
        %v1071 = vmax.f32 %v1069, %v1070
        %v1072 = vrot.slane %v1071, 2
        %v1073 = vmax.f32 %v1071, %v1072
        %v1074 = vrot.slane %v1073, 1
        %v1075 = vmax.f32 %v1073, %v1074
        %v1076 = vmax.f32 %v478, %v480
        %v1077 = vmax.f32 %v1076, %v482
        %v1078 = vmax.f32 %v1077, %v484
        %v1079 = vmax.f32 %v1078, %v486
        %v1080 = vmax.f32 %v1079, %v488
        %v1081 = vmax.f32 %v1080, %v490
        %v1082 = vmax.f32 %v1081, %v492
        %v1083 = vmax.f32 %v1082, %v494
        %v1084 = vmax.f32 %v1083, %v496
        %v1085 = vmax.f32 %v1084, %v498
        %v1086 = vmax.f32 %v1085, %v500
        %v1087 = vmax.f32 %v1086, %v502
        %v1088 = vmax.f32 %v1087, %v504
        %v1089 = vmax.f32 %v1088, %v506
        %v1090 = vmax.f32 %v1089, %v508
        %v1091 = vmax.f32 %v1090, %v510
        %v1092 = vmax.f32 %v1091, %v512
        %v1093 = vmax.f32 %v1092, %v514
        %v1094 = vmax.f32 %v1093, %v516
        %v1095 = vmax.f32 %v1094, %v518
        %v1096 = vmax.f32 %v1095, %v520
        %v1097 = vmax.f32 %v1096, %v522
        %v1098 = vmax.f32 %v1097, %v524
        %v1099 = vmax.f32 %v1098, %v526
        %v1100 = vmax.f32 %v1099, %v528
        %v1101 = vmax.f32 %v1100, %v530
        %v1102 = vmax.f32 %v1101, %v532
        %v1103 = vmax.f32 %v1102, %v534
        %v1104 = vmax.f32 %v1103, %v536
        %v1105 = vmax.f32 %v1104, %v538
        %v1106 = vmax.f32 %v1105, %v540
        %v1107 = vrot.slane %v1106, 4
        %v1108 = vmax.f32 %v1106, %v1107
        %v1109 = vrot.slane %v1108, 2
        %v1110 = vmax.f32 %v1108, %v1109
        %v1111 = vrot.slane %v1110, 1
        %v1112 = vmax.f32 %v1110, %v1111
        %v1113 = vmax.f32 %v541, %v543
        %v1114 = vmax.f32 %v1113, %v545
        %v1115 = vmax.f32 %v1114, %v547
        %v1116 = vmax.f32 %v1115, %v549
        %v1117 = vmax.f32 %v1116, %v551
        %v1118 = vmax.f32 %v1117, %v553
        %v1119 = vmax.f32 %v1118, %v555
        %v1120 = vmax.f32 %v1119, %v557
        %v1121 = vmax.f32 %v1120, %v559
        %v1122 = vmax.f32 %v1121, %v561
        %v1123 = vmax.f32 %v1122, %v563
        %v1124 = vmax.f32 %v1123, %v565
        %v1125 = vmax.f32 %v1124, %v567
        %v1126 = vmax.f32 %v1125, %v569
        %v1127 = vmax.f32 %v1126, %v571
        %v1128 = vmax.f32 %v1127, %v573
        %v1129 = vmax.f32 %v1128, %v575
        %v1130 = vmax.f32 %v1129, %v577
        %v1131 = vmax.f32 %v1130, %v579
        %v1132 = vmax.f32 %v1131, %v581
        %v1133 = vmax.f32 %v1132, %v583
        %v1134 = vmax.f32 %v1133, %v585
        %v1135 = vmax.f32 %v1134, %v587
        %v1136 = vmax.f32 %v1135, %v589
        %v1137 = vmax.f32 %v1136, %v591
        %v1138 = vmax.f32 %v1137, %v593
        %v1139 = vmax.f32 %v1138, %v595
        %v1140 = vmax.f32 %v1139, %v597
        %v1141 = vmax.f32 %v1140, %v599
        %v1142 = vmax.f32 %v1141, %v601
        %v1143 = vmax.f32 %v1142, %v603
        %v1144 = vrot.slane %v1143, 4
        %v1145 = vmax.f32 %v1143, %v1144
        %v1146 = vrot.slane %v1145, 2
        %v1147 = vmax.f32 %v1145, %v1146
        %v1148 = vrot.slane %v1147, 1
        %v1149 = vmax.f32 %v1147, %v1148
        %v1150 = vmax.f32 %v542, %v544
        %v1151 = vmax.f32 %v1150, %v546
        %v1152 = vmax.f32 %v1151, %v548
        %v1153 = vmax.f32 %v1152, %v550
        %v1154 = vmax.f32 %v1153, %v552
        %v1155 = vmax.f32 %v1154, %v554
        %v1156 = vmax.f32 %v1155, %v556
        %v1157 = vmax.f32 %v1156, %v558
        %v1158 = vmax.f32 %v1157, %v560
        %v1159 = vmax.f32 %v1158, %v562
        %v1160 = vmax.f32 %v1159, %v564
        %v1161 = vmax.f32 %v1160, %v566
        %v1162 = vmax.f32 %v1161, %v568
        %v1163 = vmax.f32 %v1162, %v570
        %v1164 = vmax.f32 %v1163, %v572
        %v1165 = vmax.f32 %v1164, %v574
        %v1166 = vmax.f32 %v1165, %v576
        %v1167 = vmax.f32 %v1166, %v578
        %v1168 = vmax.f32 %v1167, %v580
        %v1169 = vmax.f32 %v1168, %v582
        %v1170 = vmax.f32 %v1169, %v584
        %v1171 = vmax.f32 %v1170, %v586
        %v1172 = vmax.f32 %v1171, %v588
        %v1173 = vmax.f32 %v1172, %v590
        %v1174 = vmax.f32 %v1173, %v592
        %v1175 = vmax.f32 %v1174, %v594
        %v1176 = vmax.f32 %v1175, %v596
        %v1177 = vmax.f32 %v1176, %v598
        %v1178 = vmax.f32 %v1177, %v600
        %v1179 = vmax.f32 %v1178, %v602
        %v1180 = vmax.f32 %v1179, %v604
        %v1181 = vrot.slane %v1180, 4
        %v1182 = vmax.f32 %v1180, %v1181
        %v1183 = vrot.slane %v1182, 2
        %v1184 = vmax.f32 %v1182, %v1183
        %v1185 = vrot.slane %v1184, 1
        %v1186 = vmax.f32 %v1184, %v1185
        %v1187 = vmax.f32 %v605, %v607
        %v1188 = vmax.f32 %v1187, %v609
        %v1189 = vmax.f32 %v1188, %v611
        %v1190 = vmax.f32 %v1189, %v613
        %v1191 = vmax.f32 %v1190, %v615
        %v1192 = vmax.f32 %v1191, %v617
        %v1193 = vmax.f32 %v1192, %v619
        %v1194 = vmax.f32 %v1193, %v621
        %v1195 = vmax.f32 %v1194, %v623
        %v1196 = vmax.f32 %v1195, %v625
        %v1197 = vmax.f32 %v1196, %v627
        %v1198 = vmax.f32 %v1197, %v629
        %v1199 = vmax.f32 %v1198, %v631
        %v1200 = vmax.f32 %v1199, %v633
        %v1201 = vmax.f32 %v1200, %v635
        %v1202 = vmax.f32 %v1201, %v637
        %v1203 = vmax.f32 %v1202, %v639
        %v1204 = vmax.f32 %v1203, %v641
        %v1205 = vmax.f32 %v1204, %v643
        %v1206 = vmax.f32 %v1205, %v645
        %v1207 = vmax.f32 %v1206, %v647
        %v1208 = vmax.f32 %v1207, %v649
        %v1209 = vmax.f32 %v1208, %v651
        %v1210 = vmax.f32 %v1209, %v653
        %v1211 = vmax.f32 %v1210, %v655
        %v1212 = vmax.f32 %v1211, %v657
        %v1213 = vmax.f32 %v1212, %v659
        %v1214 = vmax.f32 %v1213, %v661
        %v1215 = vmax.f32 %v1214, %v663
        %v1216 = vmax.f32 %v1215, %v665
        %v1217 = vmax.f32 %v1216, %v667
        %v1218 = vrot.slane %v1217, 4
        %v1219 = vmax.f32 %v1217, %v1218
        %v1220 = vrot.slane %v1219, 2
        %v1221 = vmax.f32 %v1219, %v1220
        %v1222 = vrot.slane %v1221, 1
        %v1223 = vmax.f32 %v1221, %v1222
        %v1224 = vmax.f32 %v606, %v608
        %v1225 = vmax.f32 %v1224, %v610
        %v1226 = vmax.f32 %v1225, %v612
        %v1227 = vmax.f32 %v1226, %v614
        %v1228 = vmax.f32 %v1227, %v616
        %v1229 = vmax.f32 %v1228, %v618
        %v1230 = vmax.f32 %v1229, %v620
        %v1231 = vmax.f32 %v1230, %v622
        %v1232 = vmax.f32 %v1231, %v624
        %v1233 = vmax.f32 %v1232, %v626
        %v1234 = vmax.f32 %v1233, %v628
        %v1235 = vmax.f32 %v1234, %v630
        %v1236 = vmax.f32 %v1235, %v632
        %v1237 = vmax.f32 %v1236, %v634
        %v1238 = vmax.f32 %v1237, %v636
        %v1239 = vmax.f32 %v1238, %v638
        %v1240 = vmax.f32 %v1239, %v640
        %v1241 = vmax.f32 %v1240, %v642
        %v1242 = vmax.f32 %v1241, %v644
        %v1243 = vmax.f32 %v1242, %v646
        %v1244 = vmax.f32 %v1243, %v648
        %v1245 = vmax.f32 %v1244, %v650
        %v1246 = vmax.f32 %v1245, %v652
        %v1247 = vmax.f32 %v1246, %v654
        %v1248 = vmax.f32 %v1247, %v656
        %v1249 = vmax.f32 %v1248, %v658
        %v1250 = vmax.f32 %v1249, %v660
        %v1251 = vmax.f32 %v1250, %v662
        %v1252 = vmax.f32 %v1251, %v664
        %v1253 = vmax.f32 %v1252, %v666
        %v1254 = vmax.f32 %v1253, %v668
        %v1255 = vrot.slane %v1254, 4
        %v1256 = vmax.f32 %v1254, %v1255
        %v1257 = vrot.slane %v1256, 2
        %v1258 = vmax.f32 %v1256, %v1257
        %v1259 = vrot.slane %v1258, 1
        %v1260 = vmax.f32 %v1258, %v1259
        %vm1277 = vcmask 1041409
        %v1278 = vsel %vm1277, %v779, %v705
        %vm1279 = vcmask 1042434
        %v1280 = vsel %vm1279, %v853, %v1278
        %vm1281 = vcmask 1043459
        %v1282 = vsel %vm1281, %v927, %v1280
        %vm1283 = vcmask 1044484
        %v1284 = vsel %vm1283, %v1001, %v1282
        %vm1285 = vcmask 1045509
        %v1286 = vsel %vm1285, %v1075, %v1284
        %vm1287 = vcmask 1046534
        %v1288 = vsel %vm1287, %v1149, %v1286
        %vm1289 = vcmask 1047559
        %v1290 = vsel %vm1289, %v1223, %v1288
        %v1291 = vsel %vm1277, %v816, %v742
        %v1292 = vsel %vm1279, %v890, %v1291
        %v1293 = vsel %vm1281, %v964, %v1292
        %v1294 = vsel %vm1283, %v1038, %v1293
        %v1295 = vsel %vm1285, %v1112, %v1294
        %v1296 = vsel %vm1287, %v1186, %v1295
        %v1297 = vsel %vm1289, %v1260, %v1296
        %1300 = vst [vmem:[%s153] sm:$0xff] %v1290
        %1301 = vst [vmem:[%s153 + $0x8] sm:$0xff] %v1297
        %s1302 = sand.u32 %s68, 1
        %s1303 = scalar_lea.sflag [#allocation4], %s1302
        %s1304 = sand.u32 %s68, 1
        %s1305 = smul.addr %s1304, 16
        %s1306 = scalar_lea.vmem [#allocation5], %s1305
        // Predicated region
        $region29: #{tpu_custom_call.1} parent=23 // pred_check
          %p1307 = pneg %p78
        $region30: #{tpu_custom_call.1} parent=23 // pred_check_branch
          %1309 = sbr.rel (%p1307) target = $region32
        $region31: #{tpu_custom_call.1} parent=23 // pred_region
          %s1310 = smul.u32 2, %s23
          %s1312 = ssub.s32 256, 256
          %1313 = vsyncadd %s1303, %s1312
          %s1314 = smul.addr %s22, 2
          %s1315 = sadd.s32 %s1310, %s1314
          %s1316 = smul.addr %s1315, 128
          %s1317 = scalar_lea.hbm %s1, %s1316
          %s1319 = sshll.u32 %s1306, 4
          %s1320 = int_to_ptr.vmem [resolvable:$true] %s1319
          %1322 = dma.vmem_to_hbm [thread:$0]  %s1320, 256, %s1317, %s1303
        $region32: #{tpu_custom_call.1} parent=23 // pred_fallthru
          _
      $region24: #{tpu_custom_call.1} parent=5 // pred_fallthru
        _
      %p1323 = scmp.le.s32.totalorder 2, %s13
      // Predicated region
      $region33: #{tpu_custom_call.1} parent=5 // pred_check
        %p1324 = pneg %p1323
      $region34: #{tpu_custom_call.1} parent=5 // pred_check_branch
        %1326 = sbr.rel (%p1324) target = $region36
      $region35: #{tpu_custom_call.1} parent=5 // pred_region
        %s1327 = ssub.s32 %s13, 2
        // Predicated region
        $region37: #{tpu_custom_call.1} parent=35 // pred_check
          %p1328 = pneg %p84
        $region38: #{tpu_custom_call.1} parent=35 // pred_check_branch
          %1330 = sbr.rel (%p1328) target = $region40
        $region39: #{tpu_custom_call.1} parent=35 // pred_region
          %s1331 = sand.u32 %s69, 1
          %s1332 = scalar_lea.sflag [#allocation4], %s1331
          %s1333 = sand.u32 %s69, 1
          %s1334 = smul.addr %s1333, 16
          %s1335 = scalar_lea.vmem [#allocation5], %s1334
          %1336 = dma.done %s1332, 256
        $region40: #{tpu_custom_call.1} parent=35 // pred_fallthru
          _
      $region36: #{tpu_custom_call.1} parent=5 // pred_fallthru
        _
    $region6: #{tpu_custom_call.1} parent=1 // loop_footer
      %s17 = sadd.s32 1, %s13
    $region7: #{tpu_custom_call.1} parent=1 // loop_footer_branch
      %12 = sbr.rel target = $region3
    $region8: #{tpu_custom_call.1} parent=1 // loop_exit
      _
    %1337 = vsyncpa [#allocation3], 1
    %s1338 = scalar_lea.sflag [#allocation3], 1
    %1339 = vsyncpa %s1338, 1
    %1340 = vsyncpa [#allocation4], 1
    %s1341 = scalar_lea.sflag [#allocation4], 1
    %1342 = vsyncpa %s1341, 1

</llo_original>
